<compile_context>
chip_gen: v6e
topology: v6e:2x2x1
jax: 0.10.0
libtpu: 0.0.40
codegen_flags: <defaults>
</compile_context>

<pallas_src>
import functools

import jax
import jax.numpy as jnp
from jax.experimental import pallas as pl
from jax.experimental.pallas import tpu as pltpu

# ---------------- configuration (small, consistent with the module) ----------------
VOCAB     = 50     # num_words
NUM_TAGS  = 8      # num_tags
WORD_EMB  = 16     # word_embedding_size
WINDOW    = 2      # window
HIDDEN    = 32     # hidden_size
PAD_IDX   = 0      # padding_idx
BATCH     = 2
SEQ       = 8

CTX  = 2 * WINDOW + 1          # context words per position
FEAT = CTX * WORD_EMB          # total_features_size (defaults: no prefix/suffix)
LANE = 128                     # TPU lane width — token/center axis padded to this


def tagger_kernel(emb_ref, w1_ref, b1_ref, w2_ref, b2_ref, tag_ref, mask_ref, out_ref):
    """Single invocation — whole (tiny) batch folded in, tokens on the lane axis.

    emb_ref : (E, N + 2W)  embedded padded sequence (bf16 on perf path)
    w1_ref  : (CTX*H, E)   ff[0].weight split into CTX stacked (H, E) offset blocks
    b1_ref  : (H, 1)       f32
    w2_ref  : (T, H)       ff[-1].weight
    b2_ref  : (T, 1)       f32
    tag_ref : (1, N)       int32 gold-tag row
    mask_ref: (1, N)       f32 mask row (0 on pad / invalid inter-sentence centers)
    out_ref : (1, N)       f32 per-center masked cross-entropy (lane-dense, N % 128 == 0)
    """
    hidden   = b1_ref.shape[0]
    num_tags = w2_ref.shape[0]
    ctx      = w1_ref.shape[0] // hidden
    n        = out_ref.shape[1]

    # ff[0]: windowed Linear as CTX accumulated small matmuls over lane-offset slices
    # of the single resident embedded block (no 5x replicated HBM operand).
    acc = jnp.zeros((hidden, n), jnp.float32)
    for k in range(ctx):                                         # static unroll (CTX=5)
        w1_k  = w1_ref[pl.ds(k * hidden, hidden), :]             # (H, E)
        emb_k = emb_ref[:, pl.ds(k, n)]                          # (E, N) lane-offset slice
        acc += jnp.dot(w1_k, emb_k, preferred_element_type=jnp.float32)
    h = jnp.tanh(acc + b1_ref[...])                              # (H, N) f32 (EUP in f32)
    # TODO(synk): nn.Dropout(0.5) in self.ff treated as identity (eval semantics).

    # ff[-1]: Linear -> logits, tags on sublanes / tokens on lanes.
    logits = (jnp.dot(w2_ref[...], h.astype(w2_ref.dtype),
                      preferred_element_type=jnp.float32)
              + b2_ref[...])                                     # (T, N) f32

    # Per-token cross entropy: lse(logits) - logits[tag], masked.  All f32.
    m   = jnp.max(logits, axis=0, keepdims=True)                 # (1, N)
    lse = m + jnp.log(jnp.sum(jnp.exp(logits - m), axis=0, keepdims=True))
    tag_ids   = jax.lax.broadcasted_iota(jnp.int32, (num_tags, n), 0)
    tag_logit = jnp.sum(jnp.where(tag_ids == tag_ref[...], logits, 0.0),
                        axis=0, keepdims=True)                   # (1, N)

    out_ref[...] = mask_ref[...] * (lse - tag_logit)             # lane-dense store


@functools.partial(jax.jit, static_argnames=("compute_dtype",))
def feedforward_tagger_loss(words, tags, mask, params, *, compute_dtype=jnp.bfloat16):
    """Equivalent of FeedforwardTagger.forward(words, tags, mask=mask) with defaults."""
    word_emb, w1, b1, w2, b2 = params      # torch layouts: w1 (H, FEAT), w2 (T, H)
    B, S = words.shape
    sp  = S + 2 * WINDOW                   # padded sentence length
    np_ = B * sp                           # window-center columns (incl. invalid ones)
    nc  = LANE * pl.cdiv(np_, LANE)        # lane-padded center count (multiple of 128)

    # ---- glue (plain JAX, fused by XLA under jit) -----------------------------------
    # Flat padded word ids: [W pads | sent_b | W pads] per sentence, then tail pads.
    pad_cols = jnp.full((B, WINDOW), PAD_IDX, dtype=words.dtype)
    padded = jnp.concatenate([pad_cols, words, pad_cols], axis=1).reshape(-1)     # (np_,)
    padded = jnp.concatenate(
        [padded, jnp.full((nc + 2 * WINDOW - np_,), PAD_IDX, dtype=padded.dtype)])

    # Embedded sequence built directly token-on-lane (E, nc+2W): one tiny-table gather,
    # no materialized transpose of an N-sized array.  padding_idx row is zero.
    emb_flat = jnp.take(word_emb.T, padded, axis=1).astype(compute_dtype)

    # ff[0].weight (H, CTX*E) -> CTX stacked (H, E) blocks along the sublane axis,
    # so block k multiplies the embedding of the word at window offset k.
    w1_stack = (w1.reshape(HIDDEN, CTX, WORD_EMB)
                  .transpose(1, 0, 2)
                  .reshape(CTX * HIDDEN, WORD_EMB)
                  .astype(compute_dtype))

    # int tag row + explicit f32 mask row; center c = b*sp + s is token (b, s),
    # centers with s >= S (windows crossing sentences / tail pad) are masked out.
    tag_row  = jnp.pad(tags.astype(jnp.int32), ((0, 0), (0, 2 * WINDOW))).reshape(-1)
    tag_row  = jnp.pad(tag_row, (0, nc - np_)).reshape(1, nc)
    mask_row = jnp.pad(mask.astype(jnp.float32), ((0, 0), (0, 2 * WINDOW))).reshape(-1)
    mask_row = jnp.pad(mask_row, (0, nc - np_)).reshape(1, nc)

    # Single step: everything (~20 KiB weights + a few KiB activations) fits trivially
    # in VMEM, so each operand is one whole-array VMEM block (no grid).  At scale:
    # grid over 512-2048-token lane tiles of emb/tag/mask/out, constant index_map on
    # the weights, dimension_semantics=("parallel",) for v7x megacore, and bump
    # vmem_limit_bytes on v5e (16 MiB scoped default).
    vmem = pl.BlockSpec(memory_space=pltpu.MemorySpace.VMEM)
    loss_row = pl.pallas_call(
        tagger_kernel,
        out_shape=jax.ShapeDtypeStruct((1, nc), jnp.float32),
        in_specs=[vmem] * 7,
        out_specs=vmem,
    )(emb_flat, w1_stack,
      b1.reshape(-1, 1).astype(jnp.float32),
      w2.astype(compute_dtype),
      b2.reshape(-1, 1).astype(jnp.float32),
      tag_row, mask_row)

    # token -> sentence reduction in the wrapper (no dense (N, B) segment matrix).
    return loss_row[0, :np_].reshape(B, sp).sum(axis=-1)                          # (B,)


def reference_loss(words, tags, mask, params):
    """Pure-JAX f32 reference mirroring the PyTorch forward() (independent build)."""
    word_emb, w1, b1, w2, b2 = params
    B, S = words.shape
    pad = jnp.full((B, WINDOW), PAD_IDX, dtype=words.dtype)
    padded = jnp.concatenate([pad, words, pad], axis=1)
    embedded = word_emb[padded]                                            # (B, S+2W, E)
    feats = jnp.stack(
        [embedded[:, i:i + CTX, :].reshape(B, -1) for i in range(S)], axis=1
    )                                                                      # (B, S, FEAT)
    h = jnp.tanh(feats @ w1.T + b1)
    logits = h @ w2.T + b2
    logp = jax.nn.log_softmax(logits, axis=-1)
    nll = -jnp.take_along_axis(logp, tags[..., None], axis=-1)[..., 0]
    return jnp.sum(nll * mask.astype(jnp.float32), axis=-1)


def make_params(key):
    k1, k2, k3 = jax.random.split(key, 3)
    # nn.Embedding default init ~ N(0,1), padding_idx row zeroed.
    word_emb = jax.random.normal(k1, (VOCAB, WORD_EMB), jnp.float32).at[PAD_IDX].set(0.0)
    # ff[0]: xavier_uniform with tanh gain, bias 0.  Stored in torch (out, in) layout.
    gain_tanh = 5.0 / 3.0
    lim1 = gain_tanh * (6.0 / (FEAT + HIDDEN)) ** 0.5
    w1 = jax.random.uniform(k2, (HIDDEN, FEAT), jnp.float32, -lim1, lim1)
    b1 = jnp.zeros((HIDDEN,), jnp.float32)
    # ff[-1]: xavier_uniform, bias 0.
    lim2 = (6.0 / (HIDDEN + NUM_TAGS)) ** 0.5
    w2 = jax.random.uniform(k3, (NUM_TAGS, HIDDEN), jnp.float32, -lim2, lim2)
    b2 = jnp.zeros((NUM_TAGS,), jnp.float32)
    return word_emb, w1, b1, w2, b2


if __name__ == "__main__":
    key = jax.random.PRNGKey(0)
    kp, kw, kt = jax.random.split(key, 3)

    params = make_params(kp)
    words = jax.random.randint(kw, (BATCH, SEQ), 1, VOCAB, jnp.int32)   # avoid pad idx in-seq
    tags = jax.random.randint(kt, (BATCH, SEQ), 0, NUM_TAGS, jnp.int32)
    mask = jnp.ones((BATCH, SEQ), jnp.float32).at[1, 6:].set(0.0)       # exercise the mask path

    ref = reference_loss(words, tags, mask, params)

    # f32 matmul path: bit-close parity with the f32 PyTorch-equivalent reference.
    loss_f32 = jax.block_until_ready(
        feedforward_tagger_loss(words, tags, mask, params, compute_dtype=jnp.float32))
    assert loss_f32.shape == (BATCH,)
    assert jnp.allclose(loss_f32, ref, rtol=1e-4, atol=1e-3), (loss_f32, ref)

    # bf16 matmul operands (perf path): halves the streamed HBM bytes, native MXU bf16.
    loss_bf16 = jax.block_until_ready(
        feedforward_tagger_loss(words, tags, mask, params, compute_dtype=jnp.bfloat16))
    assert loss_bf16.shape == (BATCH,)
    assert jnp.allclose(loss_bf16, ref, rtol=3e-2, atol=2e-1), (loss_bf16, ref)

    print("KERNEL_OK")
</pallas_src>

<mosaic_0001>
module attributes {stable_mosaic.version = 11 : i64} {
  func.func @tagger_kernel(%arg0: memref<16x132xf32, #tpu.memory_space<vmem>>, %arg1: memref<160x16xf32, #tpu.memory_space<vmem>>, %arg2: memref<32x1xf32, #tpu.memory_space<vmem>>, %arg3: memref<8x32xf32, #tpu.memory_space<vmem>>, %arg4: memref<8x1xf32, #tpu.memory_space<vmem>>, %arg5: memref<1x128xi32, #tpu.memory_space<vmem>>, %arg6: memref<1x128xf32, #tpu.memory_space<vmem>>, %arg7: memref<1x128xf32, #tpu.memory_space<vmem>>) attributes {dimension_semantics = [], scalar_prefetch = 0 : i64, scratch_operands = 0 : i64, tpu.core_type = #tpu.core_type<tc>} {
    %cst = arith.constant 0.000000e+00 : f32
    %0 = vector.broadcast %cst : f32 to vector<32x128xf32>
    %c0 = arith.constant 0 : index
    %c0_0 = arith.constant 0 : index
    %1 = vector.load %arg1[%c0, %c0_0] : memref<160x16xf32, #tpu.memory_space<vmem>>, vector<32x16xf32>
    %c0_1 = arith.constant 0 : index
    %c0_2 = arith.constant 0 : index
    %2 = vector.load %arg0[%c0_1, %c0_2] : memref<16x132xf32, #tpu.memory_space<vmem>>, vector<16x128xf32>
    %cst_3 = arith.constant dense<0.000000e+00> : vector<32x128xf32>
    %3 = tpu.matmul %1, %2, %cst_3 {dimension_numbers = #tpu.dot_dimension_numbers<[1], [0], [0], [1], [0, 0, 1, 1], [], []>} : vector<32x16xf32>, vector<16x128xf32>, vector<32x128xf32> -> vector<32x128xf32>
    %4 = arith.addf %0, %3 : vector<32x128xf32>
    %c32 = arith.constant 32 : index
    %c0_4 = arith.constant 0 : index
    %5 = vector.load %arg1[%c32, %c0_4] : memref<160x16xf32, #tpu.memory_space<vmem>>, vector<32x16xf32>
    %c0_5 = arith.constant 0 : index
    %c1 = arith.constant 1 : index
    %6 = vector.load %arg0[%c0_5, %c1] : memref<16x132xf32, #tpu.memory_space<vmem>>, vector<16x128xf32>
    %cst_6 = arith.constant dense<0.000000e+00> : vector<32x128xf32>
    %7 = tpu.matmul %5, %6, %cst_6 {dimension_numbers = #tpu.dot_dimension_numbers<[1], [0], [0], [1], [0, 0, 1, 1], [], []>} : vector<32x16xf32>, vector<16x128xf32>, vector<32x128xf32> -> vector<32x128xf32>
    %8 = arith.addf %4, %7 : vector<32x128xf32>
    %c64 = arith.constant 64 : index
    %c0_7 = arith.constant 0 : index
    %9 = vector.load %arg1[%c64, %c0_7] : memref<160x16xf32, #tpu.memory_space<vmem>>, vector<32x16xf32>
    %c0_8 = arith.constant 0 : index
    %c2 = arith.constant 2 : index
    %10 = vector.load %arg0[%c0_8, %c2] : memref<16x132xf32, #tpu.memory_space<vmem>>, vector<16x128xf32>
    %cst_9 = arith.constant dense<0.000000e+00> : vector<32x128xf32>
    %11 = tpu.matmul %9, %10, %cst_9 {dimension_numbers = #tpu.dot_dimension_numbers<[1], [0], [0], [1], [0, 0, 1, 1], [], []>} : vector<32x16xf32>, vector<16x128xf32>, vector<32x128xf32> -> vector<32x128xf32>
    %12 = arith.addf %8, %11 : vector<32x128xf32>
    %c96 = arith.constant 96 : index
    %c0_10 = arith.constant 0 : index
    %13 = vector.load %arg1[%c96, %c0_10] : memref<160x16xf32, #tpu.memory_space<vmem>>, vector<32x16xf32>
    %c0_11 = arith.constant 0 : index
    %c3 = arith.constant 3 : index
    %14 = vector.load %arg0[%c0_11, %c3] : memref<16x132xf32, #tpu.memory_space<vmem>>, vector<16x128xf32>
    %cst_12 = arith.constant dense<0.000000e+00> : vector<32x128xf32>
    %15 = tpu.matmul %13, %14, %cst_12 {dimension_numbers = #tpu.dot_dimension_numbers<[1], [0], [0], [1], [0, 0, 1, 1], [], []>} : vector<32x16xf32>, vector<16x128xf32>, vector<32x128xf32> -> vector<32x128xf32>
    %16 = arith.addf %12, %15 : vector<32x128xf32>
    %c128 = arith.constant 128 : index
    %c0_13 = arith.constant 0 : index
    %17 = vector.load %arg1[%c128, %c0_13] : memref<160x16xf32, #tpu.memory_space<vmem>>, vector<32x16xf32>
    %c0_14 = arith.constant 0 : index
    %c4 = arith.constant 4 : index
    %18 = vector.load %arg0[%c0_14, %c4] : memref<16x132xf32, #tpu.memory_space<vmem>>, vector<16x128xf32>
    %cst_15 = arith.constant dense<0.000000e+00> : vector<32x128xf32>
    %19 = tpu.matmul %17, %18, %cst_15 {dimension_numbers = #tpu.dot_dimension_numbers<[1], [0], [0], [1], [0, 0, 1, 1], [], []>} : vector<32x16xf32>, vector<16x128xf32>, vector<32x128xf32> -> vector<32x128xf32>
    %20 = arith.addf %16, %19 : vector<32x128xf32>
    %c0_16 = arith.constant 0 : index
    %c0_17 = arith.constant 0 : index
    %21 = vector.load %arg2[%c0_16, %c0_17] : memref<32x1xf32, #tpu.memory_space<vmem>>, vector<32x1xf32>
    %22 = vector.broadcast %21 : vector<32x1xf32> to vector<32x128xf32>
    %23 = arith.addf %20, %22 : vector<32x128xf32>
    %24 = math.tanh %23 : vector<32x128xf32>
    %c0_18 = arith.constant 0 : index
    %c0_19 = arith.constant 0 : index
    %25 = vector.load %arg3[%c0_18, %c0_19] : memref<8x32xf32, #tpu.memory_space<vmem>>, vector<8x32xf32>
    %cst_20 = arith.constant dense<0.000000e+00> : vector<8x128xf32>
    %26 = tpu.matmul %25, %24, %cst_20 {dimension_numbers = #tpu.dot_dimension_numbers<[1], [0], [0], [1], [0, 0, 1, 1], [], []>} : vector<8x32xf32>, vector<32x128xf32>, vector<8x128xf32> -> vector<8x128xf32>
    %c0_21 = arith.constant 0 : index
    %c0_22 = arith.constant 0 : index
    %27 = vector.load %arg4[%c0_21, %c0_22] : memref<8x1xf32, #tpu.memory_space<vmem>>, vector<8x1xf32>
    %28 = vector.broadcast %27 : vector<8x1xf32> to vector<8x128xf32>
    %29 = arith.addf %26, %28 : vector<8x128xf32>
    %cst_23 = arith.constant dense<0xFF800000> : vector<128xf32>
    %30 = vector.multi_reduction <maximumf>, %29, %cst_23 [0] : vector<8x128xf32> to vector<128xf32>
    %31 = vector.shape_cast %30 : vector<128xf32> to vector<1x128xf32>
    %32 = vector.broadcast %31 : vector<1x128xf32> to vector<8x128xf32>
    %33 = arith.subf %29, %32 : vector<8x128xf32>
    %34 = math.exp %33 : vector<8x128xf32>
    %cst_24 = arith.constant dense<0.000000e+00> : vector<128xf32>
    %35 = vector.multi_reduction <add>, %34, %cst_24 [0] : vector<8x128xf32> to vector<128xf32>
    %36 = vector.shape_cast %35 : vector<128xf32> to vector<1x128xf32>
    %37 = math.log %36 : vector<1x128xf32>
    %38 = arith.addf %31, %37 : vector<1x128xf32>
    %39 = tpu.iota {dimensions = array<i32: 0>} : vector<8x128xi32>
    %c0_25 = arith.constant 0 : index
    %c0_26 = arith.constant 0 : index
    %40 = vector.load %arg5[%c0_25, %c0_26] : memref<1x128xi32, #tpu.memory_space<vmem>>, vector<1x128xi32>
    %41 = vector.broadcast %40 : vector<1x128xi32> to vector<8x128xi32>
    %42 = arith.cmpi eq, %39, %41 : vector<8x128xi32>
    %cst_27 = arith.constant 0.000000e+00 : f32
    %43 = vector.broadcast %cst_27 : f32 to vector<8x128xf32>
    %44 = arith.select %42, %29, %43 : vector<8x128xi1>, vector<8x128xf32>
    %cst_28 = arith.constant dense<0.000000e+00> : vector<128xf32>
    %45 = vector.multi_reduction <add>, %44, %cst_28 [0] : vector<8x128xf32> to vector<128xf32>
    %46 = vector.shape_cast %45 : vector<128xf32> to vector<1x128xf32>
    %c0_29 = arith.constant 0 : index
    %c0_30 = arith.constant 0 : index
    %47 = vector.load %arg6[%c0_29, %c0_30] : memref<1x128xf32, #tpu.memory_space<vmem>>, vector<1x128xf32>
    %48 = arith.subf %38, %46 : vector<1x128xf32>
    %49 = arith.mulf %47, %48 : vector<1x128xf32>
    %c0_31 = arith.constant 0 : index
    %c0_32 = arith.constant 0 : index
    %50 = vector.load %arg7[%c0_31, %c0_32] : memref<1x128xf32, #tpu.memory_space<vmem>>, vector<1x128xf32>
    tpu.vector_store %arg7[%c0_31, %c0_32], %49 {strides = array<i32>} : memref<1x128xf32, #tpu.memory_space<vmem>>, vector<1x128xf32>,
    return
  }
}

</mosaic_0001>

<llo_original>
// kernel: squeeze.1
$region0: #{squeeze.1}
  %s0 = inlined_call_operand.vmem [shape: f32[24], index: 0, kind: input, shape index: {}]
  %s1 = inlined_call_operand.vmem [shape: f32[2,12], index: 1, kind: output, shape index: {}]
  $region1: #{squeeze.1} parent=0
    #allocation0 [shape = 'u8[4096]{0}', space=vmem, size = 0x1000, scoped, tag = 'scoped mem for output reshape']
    #allocation1 [shape = 'u8[4096]{0}', space=vmem, size = 0x1000, scoped, tag = 'scoped mem for input reshape']
    %s3 = sshll.u32 1, 1
    %s4 = ssub.s32 %s3, 1
    %v5 = vld [vmem:[%s0] sm:%s4]
    %6 = vst [vmem:[#allocation1] sm:%s4] %v5
    %v7 = vld [vmem:[#allocation1] sm:$0x1]
    %vm8 = vcmask 97280
    %9 = vst.msk [vmem:[#allocation0] sm:$0x1] %vm8, %v7
    %v10 = vld [vmem:[#allocation1] sm:$0x1]
    %11 = vrot.lane.b32.xlu0 %v10, 116
    %v12 = vpop.permute.xlu0 %11
    %vm13 = vcmask 97280
    %s14 = scalar_lea.vmem [#allocation0], 1
    %15 = vst.msk [vmem:[%s14] sm:$0x1] %vm13, %v12
    %s17 = sshll.u32 1, 2
    %s18 = ssub.s32 %s17, 1
    %v20 = vld [vmem:[#allocation0] sm:%s18]
    %s21 = sshll.u32 1, 2
    %s22 = ssub.s32 %s21, 1
    %23 = vst [vmem:[%s1] sm:%s22] %v20

// kernel: feedforward_tagger_loss.1
$region0: #{feedforward_tagger_loss.1}
  #allocation0 [shape = 'u32[]', space=smem, size = 0x4, offset = 0x4, fixed_abs, tag = 'smem constant byte address 0x4 - core index']
  #allocation1 [shape = 'u32[144,128]{1,0:T(1,128)}', space=vmem, size = 0x12000, scoped, tag = 'internal scratch']
  %s0 = inlined_call_operand.vmem [shape: f32[16,132], index: 0, kind: input, shape index: {}]
  %s1 = inlined_call_operand.vmem [shape: f32[160,16], index: 1, kind: input, shape index: {}]
  %s2 = inlined_call_operand.vmem [shape: f32[32,1], index: 2, kind: input, shape index: {}]
  %s3 = inlined_call_operand.vmem [shape: f32[8,32], index: 3, kind: input, shape index: {}]
  %s4 = inlined_call_operand.vmem [shape: f32[8,1], index: 4, kind: input, shape index: {}]
  %s5 = inlined_call_operand.vmem [shape: s32[1,128], index: 5, kind: input, shape index: {}]
  %s6 = inlined_call_operand.vmem [shape: f32[1,128], index: 6, kind: input, shape index: {}]
  %s7 = inlined_call_operand.vmem [shape: f32[1,128], index: 7, kind: output, shape index: {}]
  %s8 = sld [smem:[#allocation0]]
  $region38: #{feedforward_tagger_loss.1} parent=0
    _
  %s10 = ssub.s32 1, %s8
  %s11 = scalar_select 0, %s10, %s8
  // Predicated region
  $region2: #{feedforward_tagger_loss.1} parent=0 // pred_check
    _
  $region3: #{feedforward_tagger_loss.1} parent=0 // pred_check_branch
    %13 = sbr.rel (0) target = $region5
  $region4: #{feedforward_tagger_loss.1} parent=0 // pred_region
    _
  $region5: #{feedforward_tagger_loss.1} parent=0 // pred_fallthru
    _
  // Predicated region
  $region6: #{feedforward_tagger_loss.1} parent=0 // pred_check
    _
  $region7: #{feedforward_tagger_loss.1} parent=0 // pred_check_branch
    %15 = sbr.rel (0) target = $region9
  $region8: #{feedforward_tagger_loss.1} parent=0 // pred_region
    _
  $region9: #{feedforward_tagger_loss.1} parent=0 // pred_fallthru
    _
  // Predicated region
  $region10: #{feedforward_tagger_loss.1} parent=0 // pred_check
    _
  $region11: #{feedforward_tagger_loss.1} parent=0 // pred_check_branch
    %17 = sbr.rel (0) target = $region13
  $region12: #{feedforward_tagger_loss.1} parent=0 // pred_region
    _
  $region13: #{feedforward_tagger_loss.1} parent=0 // pred_fallthru
    _
  // Predicated region
  $region14: #{feedforward_tagger_loss.1} parent=0 // pred_check
    _
  $region15: #{feedforward_tagger_loss.1} parent=0 // pred_check_branch
    %19 = sbr.rel (0) target = $region17
  $region16: #{feedforward_tagger_loss.1} parent=0 // pred_region
    _
  $region17: #{feedforward_tagger_loss.1} parent=0 // pred_fallthru
    _
  // Predicated region
  $region18: #{feedforward_tagger_loss.1} parent=0 // pred_check
    _
  $region19: #{feedforward_tagger_loss.1} parent=0 // pred_check_branch
    %21 = sbr.rel (0) target = $region21
  $region20: #{feedforward_tagger_loss.1} parent=0 // pred_region
    _
  $region21: #{feedforward_tagger_loss.1} parent=0 // pred_fallthru
    _
  // Predicated region
  $region22: #{feedforward_tagger_loss.1} parent=0 // pred_check
    _
  $region23: #{feedforward_tagger_loss.1} parent=0 // pred_check_branch
    %23 = sbr.rel (0) target = $region25
  $region24: #{feedforward_tagger_loss.1} parent=0 // pred_region
    _
  $region25: #{feedforward_tagger_loss.1} parent=0 // pred_fallthru
    _
  // Predicated region
  $region26: #{feedforward_tagger_loss.1} parent=0 // pred_check
    _
  $region27: #{feedforward_tagger_loss.1} parent=0 // pred_check_branch
    %25 = sbr.rel (0) target = $region29
  $region28: #{feedforward_tagger_loss.1} parent=0 // pred_region
    _
  $region29: #{feedforward_tagger_loss.1} parent=0 // pred_fallthru
    _
  %v26 = vld [vmem:[%s1] sm:$0xff]
  %v27 = vld [vmem:[%s1 + $0x8] sm:$0xff]
  %v28 = vld [vmem:[%s1 + $0x10] sm:$0xff]
  %v29 = vld [vmem:[%s1 + $0x18] sm:$0xff]
  %v30 = vld [vmem:[%s0] sm:$0xff]
  %v31 = vld [vmem:[%s0 + $0x10] sm:$0xff]
  %v32 = vld [vmem:[%s1 + $0x20] sm:$0xff]
  %v33 = vld [vmem:[%s1 + $0x28] sm:$0xff]
  %v34 = vld [vmem:[%s1 + $0x30] sm:$0xff]
  %v35 = vld [vmem:[%s1 + $0x38] sm:$0xff]
  %v36 = vld [vmem:[%s0 + $0x8] sm:$0xff]
  %v37 = vld [vmem:[%s0 + $0x18] sm:$0xff]
  %42 = vrot.lane.b32.xlu0 %v30, 127
  %v43 = vpop.permute.xlu0 %42
  %44 = vrot.lane.b32.xlu0 %v36, 127
  %v45 = vpop.permute.xlu0 %44
  %46 = vrot.lane.b32.xlu0 %v31, 127
  %v47 = vpop.permute.xlu0 %46
  %48 = vrot.lane.b32.xlu0 %v37, 127
  %v49 = vpop.permute.xlu0 %48
  %vm50 = vcmask 1039360
  %v51 = vsel %vm50, %v43, %v45
  %v52 = vsel %vm50, %v47, %v49
  %vm55 = vcmask 130048
  %v57 = vsel %vm55, %v32, 0
  %v60 = vsel %vm55, %v33, 0
  %v63 = vsel %vm55, %v34, 0
  %v66 = vsel %vm55, %v35, 0
  %68 = vmatprep.subr.mxu0 0.0
  %69 = vmatpush1.msra.mxu0 0.0
  %70 = vmatprep.subr.mxu0 0.0
  %71 = vmatpush1.msra.mxu0 0.0
  %72 = vmatprep.subr.mxu0 0.0
  %73 = vmatpush1.msra.mxu0 0.0
  %74 = vmatprep.subr.mxu0 0.0
  %75 = vmatpush1.msra.mxu0 0.0
  %76 = vmatprep.subr.mxu0 0.0
  %77 = vmatpush1.msra.mxu0 0.0
  %78 = vmatprep.subr.mxu0 0.0
  %79 = vmatpush1.msra.mxu0 0.0
  %80 = vmatprep.subr.mxu0 0.0
  %81 = vmatpush1.msra.mxu0 0.0
  %82 = vmatprep.subr.mxu0 0.0
  %83 = vmatpush1.msra.mxu0 0.0
  %84 = vmatprep.subr.mxu0 0.0
  %85 = vmatpush1.msra.mxu0 0.0
  %86 = vmatprep.subr.mxu0 0.0
  %87 = vmatpush1.msra.mxu0 0.0
  %88 = vmatprep.subr.mxu0 0.0
  %89 = vmatpush1.msra.mxu0 0.0
  %90 = vmatprep.subr.mxu0 0.0
  %91 = vmatpush1.msra.mxu0 0.0
  %92 = vmatprep.subr.mxu0 0.0
  %93 = vmatpush1.msra.mxu0 0.0
  %94 = vmatprep.subr.mxu0 0.0
  %95 = vmatpush1.msra.mxu0 0.0
  %96 = vmatprep.subr.mxu0 0.0
  %97 = vmatpush1.msra.mxu0 %v52
  %98 = vmatprep.subr.mxu0 0.0
  %99 = vmatpush1.msra.mxu0 %v51
  %100 = vmatprep.subr.mxu0 0.0
  %101 = vmatpush2.msra.mxu0 0.0
  %102 = vmatprep.subr.mxu0 0.0
  %103 = vmatpush2.msra.mxu0 0.0
  %104 = vmatprep.subr.mxu0 0.0
  %105 = vmatpush2.msra.mxu0 0.0
  %106 = vmatprep.subr.mxu0 0.0
  %107 = vmatpush2.msra.mxu0 0.0
  %108 = vmatprep.subr.mxu0 0.0
  %109 = vmatpush2.msra.mxu0 0.0
  %110 = vmatprep.subr.mxu0 0.0
  %111 = vmatpush2.msra.mxu0 0.0
  %112 = vmatprep.subr.mxu0 0.0
  %113 = vmatpush2.msra.mxu0 0.0
  %114 = vmatprep.subr.mxu0 0.0
  %115 = vmatpush2.msra.mxu0 0.0
  %116 = vmatprep.subr.mxu0 0.0
  %117 = vmatpush2.msra.mxu0 0.0
  %118 = vmatprep.subr.mxu0 0.0
  %119 = vmatpush2.msra.mxu0 0.0
  %120 = vmatprep.subr.mxu0 0.0
  %121 = vmatpush2.msra.mxu0 0.0
  %122 = vmatprep.subr.mxu0 0.0
  %123 = vmatpush2.msra.mxu0 0.0
  %124 = vmatprep.subr.mxu0 0.0
  %125 = vmatpush2.msra.mxu0 0.0
  %126 = vmatprep.subr.mxu0 0.0
  %127 = vmatpush2.msra.mxu0 0.0
  %128 = vmatprep.subr.mxu0 0.0
  %129 = vmatpush2.msra.mxu0 0.0
  %130 = vmatprep.subr.mxu0 0.0
  %131 = vmatpush2.msra.mxu0 0.0
  %132 = vmatprep.mubr.f32.mxu0 0.0
  %133 = vmatmul.mubr.f32.gmra.mxu0 %v57
  %v134 = vpop.f32.mrf.mxu0
  %v135 = vadd.f32 0.0, %v134
  %v136 = vpop.f32.mrf.mxu0
  %137 = vmatprep.mubr.f32.mxu0 0.0
  %138 = vmatmul.mubr.f32.gmra.mxu0 %v60
  %v139 = vpop.f32.mrf.mxu0
  %v140 = vadd.f32 0.0, %v139
  %v141 = vpop.f32.mrf.mxu0
  %142 = vmatprep.mubr.f32.mxu0 0.0
  %143 = vmatmul.mubr.f32.gmra.mxu0 %v63
  %v144 = vpop.f32.mrf.mxu0
  %v145 = vadd.f32 0.0, %v144
  %v146 = vpop.f32.mrf.mxu0
  %147 = vmatprep.mubr.f32.mxu0 0.0
  %148 = vmatmul.mubr.f32.gmra.mxu0 %v66
  %v149 = vpop.f32.mrf.mxu0
  %v150 = vadd.f32 0.0, %v149
  %v151 = vpop.f32.mrf.mxu0
  %152 = vdwg.mxu0
  %v154 = vsel %vm55, %v26, 0
  %v157 = vsel %vm55, %v27, 0
  %v160 = vsel %vm55, %v28, 0
  %v163 = vsel %vm55, %v29, 0
  %165 = vmatprep.subr.mxu0 0.0
  %166 = vmatpush1.msra.mxu0 0.0
  %167 = vmatprep.subr.mxu0 0.0
  %168 = vmatpush1.msra.mxu0 0.0
  %169 = vmatprep.subr.mxu0 0.0
  %170 = vmatpush1.msra.mxu0 0.0
  %171 = vmatprep.subr.mxu0 0.0
  %172 = vmatpush1.msra.mxu0 0.0
  %173 = vmatprep.subr.mxu0 0.0
  %174 = vmatpush1.msra.mxu0 0.0
  %175 = vmatprep.subr.mxu0 0.0
  %176 = vmatpush1.msra.mxu0 0.0
  %177 = vmatprep.subr.mxu0 0.0
  %178 = vmatpush1.msra.mxu0 0.0
  %179 = vmatprep.subr.mxu0 0.0
  %180 = vmatpush1.msra.mxu0 0.0
  %181 = vmatprep.subr.mxu0 0.0
  %182 = vmatpush1.msra.mxu0 0.0
  %183 = vmatprep.subr.mxu0 0.0
  %184 = vmatpush1.msra.mxu0 0.0
  %185 = vmatprep.subr.mxu0 0.0
  %186 = vmatpush1.msra.mxu0 0.0
  %187 = vmatprep.subr.mxu0 0.0
  %188 = vmatpush1.msra.mxu0 0.0
  %189 = vmatprep.subr.mxu0 0.0
  %190 = vmatpush1.msra.mxu0 0.0
  %191 = vmatprep.subr.mxu0 0.0
  %192 = vmatpush1.msra.mxu0 0.0
  %193 = vmatprep.subr.mxu0 0.0
  %194 = vmatpush1.msra.mxu0 %v31
  %195 = vmatprep.subr.mxu0 0.0
  %196 = vmatpush1.msra.mxu0 %v30
  %197 = vmatprep.subr.mxu0 0.0
  %198 = vmatpush2.msra.mxu0 0.0
  %199 = vmatprep.subr.mxu0 0.0
  %200 = vmatpush2.msra.mxu0 0.0
  %201 = vmatprep.subr.mxu0 0.0
  %202 = vmatpush2.msra.mxu0 0.0
  %203 = vmatprep.subr.mxu0 0.0
  %204 = vmatpush2.msra.mxu0 0.0
  %205 = vmatprep.subr.mxu0 0.0
  %206 = vmatpush2.msra.mxu0 0.0
  %207 = vmatprep.subr.mxu0 0.0
  %208 = vmatpush2.msra.mxu0 0.0
  %209 = vmatprep.subr.mxu0 0.0
  %210 = vmatpush2.msra.mxu0 0.0
  %211 = vmatprep.subr.mxu0 0.0
  %212 = vmatpush2.msra.mxu0 0.0
  %213 = vmatprep.subr.mxu0 0.0
  %214 = vmatpush2.msra.mxu0 0.0
  %215 = vmatprep.subr.mxu0 0.0
  %216 = vmatpush2.msra.mxu0 0.0
  %217 = vmatprep.subr.mxu0 0.0
  %218 = vmatpush2.msra.mxu0 0.0
  %219 = vmatprep.subr.mxu0 0.0
  %220 = vmatpush2.msra.mxu0 0.0
  %221 = vmatprep.subr.mxu0 0.0
  %222 = vmatpush2.msra.mxu0 0.0
  %223 = vmatprep.subr.mxu0 0.0
  %224 = vmatpush2.msra.mxu0 0.0
  %225 = vmatprep.subr.mxu0 0.0
  %226 = vmatpush2.msra.mxu0 0.0
  %227 = vmatprep.subr.mxu0 0.0
  %228 = vmatpush2.msra.mxu0 0.0
  %229 = vmatprep.mubr.f32.mxu0 0.0
  %230 = vmatmul.mubr.f32.gmra.mxu0 %v154
  %v231 = vpop.f32.mrf.mxu0
  %v232 = vadd.f32 %v135, %v231
  %v233 = vpop.f32.mrf.mxu0
  %234 = vmatprep.mubr.f32.mxu0 0.0
  %235 = vmatmul.mubr.f32.gmra.mxu0 %v157
  %v236 = vpop.f32.mrf.mxu0
  %v237 = vadd.f32 %v140, %v236
  %v238 = vpop.f32.mrf.mxu0
  %239 = vmatprep.mubr.f32.mxu0 0.0
  %240 = vmatmul.mubr.f32.gmra.mxu0 %v160
  %v241 = vpop.f32.mrf.mxu0
  %v242 = vadd.f32 %v145, %v241
  %v243 = vpop.f32.mrf.mxu0
  %244 = vmatprep.mubr.f32.mxu0 0.0
  %245 = vmatmul.mubr.f32.gmra.mxu0 %v163
  %v246 = vpop.f32.mrf.mxu0
  %v247 = vadd.f32 %v150, %v246
  %v248 = vpop.f32.mrf.mxu0
  %249 = vdwg.mxu0
  %v250 = vld [vmem:[%s1 + $0x40] sm:$0xff]
  %v251 = vld [vmem:[%s1 + $0x48] sm:$0xff]
  %v252 = vld [vmem:[%s1 + $0x50] sm:$0xff]
  %v253 = vld [vmem:[%s1 + $0x58] sm:$0xff]
  %254 = vrot.lane.b32.xlu0 %v30, 126
  %v255 = vpop.permute.xlu0 %254
  %256 = vrot.lane.b32.xlu0 %v36, 126
  %v257 = vpop.permute.xlu0 %256
  %258 = vrot.lane.b32.xlu0 %v31, 126
  %v259 = vpop.permute.xlu0 %258
  %260 = vrot.lane.b32.xlu0 %v37, 126
  %v261 = vpop.permute.xlu0 %260
  %vm262 = vcmask 1031168
  %v263 = vsel %vm262, %v255, %v257
  %v264 = vsel %vm262, %v259, %v261
  %v268 = vsel %vm55, %v250, 0
  %v271 = vsel %vm55, %v251, 0
  %v274 = vsel %vm55, %v252, 0
  %v277 = vsel %vm55, %v253, 0
  %279 = vmatprep.subr.mxu0 0.0
  %280 = vmatpush1.msra.mxu0 0.0
  %281 = vmatprep.subr.mxu0 0.0
  %282 = vmatpush1.msra.mxu0 0.0
  %283 = vmatprep.subr.mxu0 0.0
  %284 = vmatpush1.msra.mxu0 0.0
  %285 = vmatprep.subr.mxu0 0.0
  %286 = vmatpush1.msra.mxu0 0.0
  %287 = vmatprep.subr.mxu0 0.0
  %288 = vmatpush1.msra.mxu0 0.0
  %289 = vmatprep.subr.mxu0 0.0
  %290 = vmatpush1.msra.mxu0 0.0
  %291 = vmatprep.subr.mxu0 0.0
  %292 = vmatpush1.msra.mxu0 0.0
  %293 = vmatprep.subr.mxu0 0.0
  %294 = vmatpush1.msra.mxu0 0.0
  %295 = vmatprep.subr.mxu0 0.0
  %296 = vmatpush1.msra.mxu0 0.0
  %297 = vmatprep.subr.mxu0 0.0
  %298 = vmatpush1.msra.mxu0 0.0
  %299 = vmatprep.subr.mxu0 0.0
  %300 = vmatpush1.msra.mxu0 0.0
  %301 = vmatprep.subr.mxu0 0.0
  %302 = vmatpush1.msra.mxu0 0.0
  %303 = vmatprep.subr.mxu0 0.0
  %304 = vmatpush1.msra.mxu0 0.0
  %305 = vmatprep.subr.mxu0 0.0
  %306 = vmatpush1.msra.mxu0 0.0
  %307 = vmatprep.subr.mxu0 0.0
  %308 = vmatpush1.msra.mxu0 %v264
  %309 = vmatprep.subr.mxu0 0.0
  %310 = vmatpush1.msra.mxu0 %v263
  %311 = vmatprep.subr.mxu0 0.0
  %312 = vmatpush2.msra.mxu0 0.0
  %313 = vmatprep.subr.mxu0 0.0
  %314 = vmatpush2.msra.mxu0 0.0
  %315 = vmatprep.subr.mxu0 0.0
  %316 = vmatpush2.msra.mxu0 0.0
  %317 = vmatprep.subr.mxu0 0.0
  %318 = vmatpush2.msra.mxu0 0.0
  %319 = vmatprep.subr.mxu0 0.0
  %320 = vmatpush2.msra.mxu0 0.0
  %321 = vmatprep.subr.mxu0 0.0
  %322 = vmatpush2.msra.mxu0 0.0
  %323 = vmatprep.subr.mxu0 0.0
  %324 = vmatpush2.msra.mxu0 0.0
  %325 = vmatprep.subr.mxu0 0.0
  %326 = vmatpush2.msra.mxu0 0.0
  %327 = vmatprep.subr.mxu0 0.0
  %328 = vmatpush2.msra.mxu0 0.0
  %329 = vmatprep.subr.mxu0 0.0
  %330 = vmatpush2.msra.mxu0 0.0
  %331 = vmatprep.subr.mxu0 0.0
  %332 = vmatpush2.msra.mxu0 0.0
  %333 = vmatprep.subr.mxu0 0.0
  %334 = vmatpush2.msra.mxu0 0.0
  %335 = vmatprep.subr.mxu0 0.0
  %336 = vmatpush2.msra.mxu0 0.0
  %337 = vmatprep.subr.mxu0 0.0
  %338 = vmatpush2.msra.mxu0 0.0
  %339 = vmatprep.subr.mxu0 0.0
  %340 = vmatpush2.msra.mxu0 0.0
  %341 = vmatprep.subr.mxu0 0.0
  %342 = vmatpush2.msra.mxu0 0.0
  %343 = vmatprep.mubr.f32.mxu0 0.0
  %344 = vmatmul.mubr.f32.gmra.mxu0 %v268
  %v345 = vpop.f32.mrf.mxu0
  %v346 = vadd.f32 0.0, %v345
  %v347 = vpop.f32.mrf.mxu0
  %348 = vmatprep.mubr.f32.mxu0 0.0
  %349 = vmatmul.mubr.f32.gmra.mxu0 %v271
  %v350 = vpop.f32.mrf.mxu0
  %v351 = vadd.f32 0.0, %v350
  %v352 = vpop.f32.mrf.mxu0
  %353 = vmatprep.mubr.f32.mxu0 0.0
  %354 = vmatmul.mubr.f32.gmra.mxu0 %v274
  %v355 = vpop.f32.mrf.mxu0
  %v356 = vadd.f32 0.0, %v355
  %v357 = vpop.f32.mrf.mxu0
  %358 = vmatprep.mubr.f32.mxu0 0.0
  %359 = vmatmul.mubr.f32.gmra.mxu0 %v277
  %v360 = vpop.f32.mrf.mxu0
  %v361 = vadd.f32 0.0, %v360
  %v362 = vpop.f32.mrf.mxu0
  %363 = vdwg.mxu0
  %v364 = vadd.f32 %v232, %v346
  %v365 = vadd.f32 %v237, %v351
  %v366 = vadd.f32 %v242, %v356
  %v367 = vadd.f32 %v247, %v361
  %v368 = vld [vmem:[%s1 + $0x60] sm:$0xff]
  %v369 = vld [vmem:[%s1 + $0x68] sm:$0xff]
  %v370 = vld [vmem:[%s1 + $0x70] sm:$0xff]
  %v371 = vld [vmem:[%s1 + $0x78] sm:$0xff]
  %372 = vrot.lane.b32.xlu0 %v30, 125
  %v373 = vpop.permute.xlu0 %372
  %374 = vrot.lane.b32.xlu0 %v36, 125
  %v375 = vpop.permute.xlu0 %374
  %376 = vrot.lane.b32.xlu0 %v31, 125
  %v377 = vpop.permute.xlu0 %376
  %378 = vrot.lane.b32.xlu0 %v37, 125
  %v379 = vpop.permute.xlu0 %378
  %vm380 = vcmask 1022976
  %v381 = vsel %vm380, %v373, %v375
  %v382 = vsel %vm380, %v377, %v379
  %v386 = vsel %vm55, %v368, 0
  %v389 = vsel %vm55, %v369, 0
  %v392 = vsel %vm55, %v370, 0
  %v395 = vsel %vm55, %v371, 0
  %397 = vmatprep.subr.mxu0 0.0
  %398 = vmatpush1.msra.mxu0 0.0
  %399 = vmatprep.subr.mxu0 0.0
  %400 = vmatpush1.msra.mxu0 0.0
  %401 = vmatprep.subr.mxu0 0.0
  %402 = vmatpush1.msra.mxu0 0.0
  %403 = vmatprep.subr.mxu0 0.0
  %404 = vmatpush1.msra.mxu0 0.0
  %405 = vmatprep.subr.mxu0 0.0
  %406 = vmatpush1.msra.mxu0 0.0
  %407 = vmatprep.subr.mxu0 0.0
  %408 = vmatpush1.msra.mxu0 0.0
  %409 = vmatprep.subr.mxu0 0.0
  %410 = vmatpush1.msra.mxu0 0.0
  %411 = vmatprep.subr.mxu0 0.0
  %412 = vmatpush1.msra.mxu0 0.0
  %413 = vmatprep.subr.mxu0 0.0
  %414 = vmatpush1.msra.mxu0 0.0
  %415 = vmatprep.subr.mxu0 0.0
  %416 = vmatpush1.msra.mxu0 0.0
  %417 = vmatprep.subr.mxu0 0.0
  %418 = vmatpush1.msra.mxu0 0.0
  %419 = vmatprep.subr.mxu0 0.0
  %420 = vmatpush1.msra.mxu0 0.0
  %421 = vmatprep.subr.mxu0 0.0
  %422 = vmatpush1.msra.mxu0 0.0
  %423 = vmatprep.subr.mxu0 0.0
  %424 = vmatpush1.msra.mxu0 0.0
  %425 = vmatprep.subr.mxu0 0.0
  %426 = vmatpush1.msra.mxu0 %v382
  %427 = vmatprep.subr.mxu0 0.0
  %428 = vmatpush1.msra.mxu0 %v381
  %429 = vmatprep.subr.mxu0 0.0
  %430 = vmatpush2.msra.mxu0 0.0
  %431 = vmatprep.subr.mxu0 0.0
  %432 = vmatpush2.msra.mxu0 0.0
  %433 = vmatprep.subr.mxu0 0.0
  %434 = vmatpush2.msra.mxu0 0.0
  %435 = vmatprep.subr.mxu0 0.0
  %436 = vmatpush2.msra.mxu0 0.0
  %437 = vmatprep.subr.mxu0 0.0
  %438 = vmatpush2.msra.mxu0 0.0
  %439 = vmatprep.subr.mxu0 0.0
  %440 = vmatpush2.msra.mxu0 0.0
  %441 = vmatprep.subr.mxu0 0.0
  %442 = vmatpush2.msra.mxu0 0.0
  %443 = vmatprep.subr.mxu0 0.0
  %444 = vmatpush2.msra.mxu0 0.0
  %445 = vmatprep.subr.mxu0 0.0
  %446 = vmatpush2.msra.mxu0 0.0
  %447 = vmatprep.subr.mxu0 0.0
  %448 = vmatpush2.msra.mxu0 0.0
  %449 = vmatprep.subr.mxu0 0.0
  %450 = vmatpush2.msra.mxu0 0.0
  %451 = vmatprep.subr.mxu0 0.0
  %452 = vmatpush2.msra.mxu0 0.0
  %453 = vmatprep.subr.mxu0 0.0
  %454 = vmatpush2.msra.mxu0 0.0
  %455 = vmatprep.subr.mxu0 0.0
  %456 = vmatpush2.msra.mxu0 0.0
  %457 = vmatprep.subr.mxu0 0.0
  %458 = vmatpush2.msra.mxu0 0.0
  %459 = vmatprep.subr.mxu0 0.0
  %460 = vmatpush2.msra.mxu0 0.0
  %461 = vmatprep.mubr.f32.mxu0 0.0
  %462 = vmatmul.mubr.f32.gmra.mxu0 %v386
  %v463 = vpop.f32.mrf.mxu0
  %v464 = vadd.f32 0.0, %v463
  %v465 = vpop.f32.mrf.mxu0
  %466 = vmatprep.mubr.f32.mxu0 0.0
  %467 = vmatmul.mubr.f32.gmra.mxu0 %v389
  %v468 = vpop.f32.mrf.mxu0
  %v469 = vadd.f32 0.0, %v468
  %v470 = vpop.f32.mrf.mxu0
  %471 = vmatprep.mubr.f32.mxu0 0.0
  %472 = vmatmul.mubr.f32.gmra.mxu0 %v392
  %v473 = vpop.f32.mrf.mxu0
  %v474 = vadd.f32 0.0, %v473
  %v475 = vpop.f32.mrf.mxu0
  %476 = vmatprep.mubr.f32.mxu0 0.0
  %477 = vmatmul.mubr.f32.gmra.mxu0 %v395
  %v478 = vpop.f32.mrf.mxu0
  %v479 = vadd.f32 0.0, %v478
  %v480 = vpop.f32.mrf.mxu0
  %481 = vdwg.mxu0
  %v482 = vadd.f32 %v364, %v464
  %v483 = vadd.f32 %v365, %v469
  %v484 = vadd.f32 %v366, %v474
  %v485 = vadd.f32 %v367, %v479
  %v486 = vld [vmem:[%s1 + $0x80] sm:$0xff]
  %v487 = vld [vmem:[%s1 + $0x88] sm:$0xff]
  %v488 = vld [vmem:[%s1 + $0x90] sm:$0xff]
  %v489 = vld [vmem:[%s1 + $0x98] sm:$0xff]
  %490 = vrot.lane.b32.xlu0 %v30, 124
  %v491 = vpop.permute.xlu0 %490
  %492 = vrot.lane.b32.xlu0 %v36, 124
  %v493 = vpop.permute.xlu0 %492
  %494 = vrot.lane.b32.xlu0 %v31, 124
  %v495 = vpop.permute.xlu0 %494
  %496 = vrot.lane.b32.xlu0 %v37, 124
  %v497 = vpop.permute.xlu0 %496
  %vm498 = vcmask 1014784
  %v499 = vsel %vm498, %v491, %v493
  %v500 = vsel %vm498, %v495, %v497
  %v504 = vsel %vm55, %v486, 0
  %v507 = vsel %vm55, %v487, 0
  %v510 = vsel %vm55, %v488, 0
  %v513 = vsel %vm55, %v489, 0
  %515 = vmatprep.subr.mxu0 0.0
  %516 = vmatpush1.msra.mxu0 0.0
  %517 = vmatprep.subr.mxu0 0.0
  %518 = vmatpush1.msra.mxu0 0.0
  %519 = vmatprep.subr.mxu0 0.0
  %520 = vmatpush1.msra.mxu0 0.0
  %521 = vmatprep.subr.mxu0 0.0
  %522 = vmatpush1.msra.mxu0 0.0
  %523 = vmatprep.subr.mxu0 0.0
  %524 = vmatpush1.msra.mxu0 0.0
  %525 = vmatprep.subr.mxu0 0.0
  %526 = vmatpush1.msra.mxu0 0.0
  %527 = vmatprep.subr.mxu0 0.0
  %528 = vmatpush1.msra.mxu0 0.0
  %529 = vmatprep.subr.mxu0 0.0
  %530 = vmatpush1.msra.mxu0 0.0
  %531 = vmatprep.subr.mxu0 0.0
  %532 = vmatpush1.msra.mxu0 0.0
  %533 = vmatprep.subr.mxu0 0.0
  %534 = vmatpush1.msra.mxu0 0.0
  %535 = vmatprep.subr.mxu0 0.0
  %536 = vmatpush1.msra.mxu0 0.0
  %537 = vmatprep.subr.mxu0 0.0
  %538 = vmatpush1.msra.mxu0 0.0
  %539 = vmatprep.subr.mxu0 0.0
  %540 = vmatpush1.msra.mxu0 0.0
  %541 = vmatprep.subr.mxu0 0.0
  %542 = vmatpush1.msra.mxu0 0.0
  %543 = vmatprep.subr.mxu0 0.0
  %544 = vmatpush1.msra.mxu0 %v500
  %545 = vmatprep.subr.mxu0 0.0
  %546 = vmatpush1.msra.mxu0 %v499
  %547 = vmatprep.subr.mxu0 0.0
  %548 = vmatpush2.msra.mxu0 0.0
  %549 = vmatprep.subr.mxu0 0.0
  %550 = vmatpush2.msra.mxu0 0.0
  %551 = vmatprep.subr.mxu0 0.0
  %552 = vmatpush2.msra.mxu0 0.0
  %553 = vmatprep.subr.mxu0 0.0
  %554 = vmatpush2.msra.mxu0 0.0
  %555 = vmatprep.subr.mxu0 0.0
  %556 = vmatpush2.msra.mxu0 0.0
  %557 = vmatprep.subr.mxu0 0.0
  %558 = vmatpush2.msra.mxu0 0.0
  %559 = vmatprep.subr.mxu0 0.0
  %560 = vmatpush2.msra.mxu0 0.0
  %561 = vmatprep.subr.mxu0 0.0
  %562 = vmatpush2.msra.mxu0 0.0
  %563 = vmatprep.subr.mxu0 0.0
  %564 = vmatpush2.msra.mxu0 0.0
  %565 = vmatprep.subr.mxu0 0.0
  %566 = vmatpush2.msra.mxu0 0.0
  %567 = vmatprep.subr.mxu0 0.0
  %568 = vmatpush2.msra.mxu0 0.0
  %569 = vmatprep.subr.mxu0 0.0
  %570 = vmatpush2.msra.mxu0 0.0
  %571 = vmatprep.subr.mxu0 0.0
  %572 = vmatpush2.msra.mxu0 0.0
  %573 = vmatprep.subr.mxu0 0.0
  %574 = vmatpush2.msra.mxu0 0.0
  %575 = vmatprep.subr.mxu0 0.0
  %576 = vmatpush2.msra.mxu0 0.0
  %577 = vmatprep.subr.mxu0 0.0
  %578 = vmatpush2.msra.mxu0 0.0
  %579 = vmatprep.mubr.f32.mxu0 0.0
  %580 = vmatmul.mubr.f32.gmra.mxu0 %v504
  %v581 = vpop.f32.mrf.mxu0
  %v582 = vadd.f32 0.0, %v581
  %v583 = vpop.f32.mrf.mxu0
  %584 = vmatprep.mubr.f32.mxu0 0.0
  %585 = vmatmul.mubr.f32.gmra.mxu0 %v507
  %v586 = vpop.f32.mrf.mxu0
  %v587 = vadd.f32 0.0, %v586
  %v588 = vpop.f32.mrf.mxu0
  %589 = vmatprep.mubr.f32.mxu0 0.0
  %590 = vmatmul.mubr.f32.gmra.mxu0 %v510
  %v591 = vpop.f32.mrf.mxu0
  %v592 = vadd.f32 0.0, %v591
  %v593 = vpop.f32.mrf.mxu0
  %594 = vmatprep.mubr.f32.mxu0 0.0
  %595 = vmatmul.mubr.f32.gmra.mxu0 %v513
  %v596 = vpop.f32.mrf.mxu0
  %v597 = vadd.f32 0.0, %v596
  %v598 = vpop.f32.mrf.mxu0
  %599 = vdwg.mxu0
  %v600 = vadd.f32 %v482, %v582
  %v601 = vadd.f32 %v483, %v587
  %v602 = vadd.f32 %v484, %v592
  %v603 = vadd.f32 %v485, %v597
  %v604 = vld [vmem:[%s2] sm:$0xff]
  %v605 = vld [vmem:[%s2 + $0x8] sm:$0xff]
  %v606 = vld [vmem:[%s2 + $0x10] sm:$0xff]
  %v607 = vld [vmem:[%s2 + $0x18] sm:$0xff]
  %609 = vset.pattern.permute.xlu0 0
  %610 = vperm.xlu0 %609, %v604
  %v611 = vpop.permute.xlu0 %610
  %614 = vset.pattern.permute.xlu0 0
  %615 = vperm.xlu0 %614, %v605
  %v616 = vpop.permute.xlu0 %615
  %619 = vset.pattern.permute.xlu0 0
  %620 = vperm.xlu0 %619, %v606
  %v621 = vpop.permute.xlu0 %620
  %624 = vset.pattern.permute.xlu0 0
  %625 = vperm.xlu0 %624, %v607
  %v626 = vpop.permute.xlu0 %625
  %v628 = vadd.f32 %v600, %v611
  %v629 = vadd.f32 %v601, %v616
  %v630 = vadd.f32 %v602, %v621
  %v631 = vadd.f32 %v603, %v626
  %v632 = vtanh.pop %v628
  %v633 = vtanh.pop %v629
  %v634 = vtanh.pop %v630
  %v635 = vtanh.pop %v631
  %v636 = vld [vmem:[%s3] sm:$0xff]
  %v637 = vld [vmem:[%s4] sm:$0xff]
  %639 = vset.pattern.permute.xlu0 0
  %640 = vperm.xlu0 %639, %v637
  %v641 = vpop.permute.xlu0 %640
  %vm643 = vcmask 261120
  %v645 = vsel %vm643, %v636, 0
  %647 = vmatprep.subr.mxu0 0.0
  %648 = vmatpush1.msra.mxu0 0.0
  %649 = vmatprep.subr.mxu0 0.0
  %650 = vmatpush1.msra.mxu0 0.0
  %651 = vmatprep.subr.mxu0 0.0
  %652 = vmatpush1.msra.mxu0 0.0
  %653 = vmatprep.subr.mxu0 0.0
  %654 = vmatpush1.msra.mxu0 0.0
  %655 = vmatprep.subr.mxu0 0.0
  %656 = vmatpush1.msra.mxu0 0.0
  %657 = vmatprep.subr.mxu0 0.0
  %658 = vmatpush1.msra.mxu0 0.0
  %659 = vmatprep.subr.mxu0 0.0
  %660 = vmatpush1.msra.mxu0 0.0
  %661 = vmatprep.subr.mxu0 0.0
  %662 = vmatpush1.msra.mxu0 0.0
  %663 = vmatprep.subr.mxu0 0.0
  %664 = vmatpush1.msra.mxu0 0.0
  %665 = vmatprep.subr.mxu0 0.0
  %666 = vmatpush1.msra.mxu0 0.0
  %667 = vmatprep.subr.mxu0 0.0
  %668 = vmatpush1.msra.mxu0 0.0
  %669 = vmatprep.subr.mxu0 0.0
  %670 = vmatpush1.msra.mxu0 0.0
  %671 = vmatprep.subr.mxu0 0.0
  %672 = vmatpush1.msra.mxu0 %v635
  %673 = vmatprep.subr.mxu0 0.0
  %674 = vmatpush1.msra.mxu0 %v634
  %675 = vmatprep.subr.mxu0 0.0
  %676 = vmatpush1.msra.mxu0 %v633
  %677 = vmatprep.subr.mxu0 0.0
  %678 = vmatpush1.msra.mxu0 %v632
  %679 = vmatprep.subr.mxu0 0.0
  %680 = vmatpush2.msra.mxu0 0.0
  %681 = vmatprep.subr.mxu0 0.0
  %682 = vmatpush2.msra.mxu0 0.0
  %683 = vmatprep.subr.mxu0 0.0
  %684 = vmatpush2.msra.mxu0 0.0
  %685 = vmatprep.subr.mxu0 0.0
  %686 = vmatpush2.msra.mxu0 0.0
  %687 = vmatprep.subr.mxu0 0.0
  %688 = vmatpush2.msra.mxu0 0.0
  %689 = vmatprep.subr.mxu0 0.0
  %690 = vmatpush2.msra.mxu0 0.0
  %691 = vmatprep.subr.mxu0 0.0
  %692 = vmatpush2.msra.mxu0 0.0
  %693 = vmatprep.subr.mxu0 0.0
  %694 = vmatpush2.msra.mxu0 0.0
  %695 = vmatprep.subr.mxu0 0.0
  %696 = vmatpush2.msra.mxu0 0.0
  %697 = vmatprep.subr.mxu0 0.0
  %698 = vmatpush2.msra.mxu0 0.0
  %699 = vmatprep.subr.mxu0 0.0
  %700 = vmatpush2.msra.mxu0 0.0
  %701 = vmatprep.subr.mxu0 0.0
  %702 = vmatpush2.msra.mxu0 0.0
  %703 = vmatprep.subr.mxu0 0.0
  %704 = vmatpush2.msra.mxu0 0.0
  %705 = vmatprep.subr.mxu0 0.0
  %706 = vmatpush2.msra.mxu0 0.0
  %707 = vmatprep.subr.mxu0 0.0
  %708 = vmatpush2.msra.mxu0 0.0
  %709 = vmatprep.subr.mxu0 0.0
  %710 = vmatpush2.msra.mxu0 0.0
  %711 = vmatprep.mubr.f32.mxu0 0.0
  %712 = vmatmul.mubr.f32.gmra.mxu0 %v645
  %v713 = vpop.f32.mrf.mxu0
  %v714 = vadd.f32 %v641, %v713
  %v715 = vpop.f32.mrf.mxu0
  %716 = vdwg.mxu0
  %v717 = vrot.slane %v714, 4
  %v718 = vmax.f32 %v714, %v717
  %v719 = vrot.slane %v718, 2
  %v720 = vmax.f32 %v718, %v719
  %v721 = vrot.slane %v720, 1
  %v722 = vmax.f32 %v720, %v721
  %v723 = vsub.f32 %v714, %v722
  %v724 = vmul.f32 %v723, 1.442695
  %v725 = vpow.pop %v724
  %v726 = vrot.slane %v725, 4
  %v727 = vadd.f32 %v725, %v726
  %v728 = vrot.slane %v727, 2
  %v729 = vadd.f32 %v727, %v728
  %v730 = vrot.slane %v729, 1
  %v731 = vadd.f32 %v729, %v730
  %v732 = vlog2.pop %v731
  %v733 = vmul.f32 %v732, 0.6931472
  %v734 = vadd.f32 %v722, %v733
  %v735 = vlaneseq
  %v736 = vshrl.u32 %v735, 7
  %v737 = vld [vmem:[%s5] sm:$0x1]
  %v738 = vlaneseq
  %v739 = vshrl.u32 %v738, 7
  %v740 = vsub.s32 0, %v739
  %v741 = vrot.slane %v737, %v740
  %vm742 = vcmp.eq.s32.totalorder %v736, %v741
  %v743 = vsel %vm742, %v714, 0.0
  %v744 = vrot.slane %v743, 4
  %v745 = vadd.f32 %v743, %v744
  %v746 = vrot.slane %v745, 2
  %v747 = vadd.f32 %v745, %v746
  %v748 = vrot.slane %v747, 1
  %v749 = vadd.f32 %v747, %v748
  %v750 = vld [vmem:[%s6] sm:$0x1]
  %v751 = vsub.f32 %v734, %v749
  %v752 = vmul.f32 %v750, %v751
  %753 = vst [vmem:[%s7] sm:$0x1] %v752
  // Predicated region
  $region30: #{feedforward_tagger_loss.1} parent=0 // pred_check
    _
  $region31: #{feedforward_tagger_loss.1} parent=0 // pred_check_branch
    %755 = sbr.rel (0) target = $region33
  $region32: #{feedforward_tagger_loss.1} parent=0 // pred_region
    _
  $region33: #{feedforward_tagger_loss.1} parent=0 // pred_fallthru
    _
  // Predicated region
  $region34: #{feedforward_tagger_loss.1} parent=0 // pred_check
    _
  $region35: #{feedforward_tagger_loss.1} parent=0 // pred_check_branch
    %757 = sbr.rel (0) target = $region37
  $region36: #{feedforward_tagger_loss.1} parent=0 // pred_region
    _
  $region37: #{feedforward_tagger_loss.1} parent=0 // pred_fallthru
    _

</llo_original>
